<compile_context>
chip_gen: v7x
topology: tpu7x:2x2x1
jax: 0.10.0
libtpu: 0.0.40
codegen_flags: <defaults>
</compile_context>

<pallas_src>
import functools

import jax
import jax.numpy as jnp
from jax.experimental import pallas as pl
from jax.experimental.pallas import tpu as pltpu


def _mlp_kernel(x_ref, wcat_ref, b1_ref, w2_ref, bout_ref, o_ref):
    """Fused 2-layer MLP + skip connection, one batch tile per grid step."""
    d_hidden = w2_ref.shape[0]

    x = x_ref[...]  # bf16 tile

    # One MXU push for both GEMMs that share x as LHS: Wcat = [W1 | Ws].
    hs = jnp.dot(x, wcat_ref[...], preferred_element_type=jnp.float32)

    # hidden = ReLU(x @ W1 + b1)   (lanes 0:d_hidden, f32)
    h = jnp.maximum(hs[:, :d_hidden] + b1_ref[...], 0.0)
    # skip = x @ Ws                (lanes d_hidden:, f32; bias folded into bout)
    skip = hs[:, d_hidden:]

    # y = h @ W2  (bf16 operands, f32 accumulation)
    y = jnp.dot(h.astype(w2_ref.dtype), w2_ref[...],
                preferred_element_type=jnp.float32)

    # out = y + skip + (b2 + bs)
    o_ref[...] = (y + skip + bout_ref[...]).astype(o_ref.dtype)


def _round_up(v, m):
    return ((v + m - 1) // m) * m


@functools.partial(jax.jit, static_argnames=("block_b",))
def mlp_forward(x, w1, b1, w2, b2, ws, bs, *, block_b=1024):
    """x: [B, D_in] f32; weights pre-transposed to [in, out]; biases [1, out]."""
    B, d_in = x.shape
    d_hidden = w1.shape[1]
    d_out = w2.shape[1]

    # Batch-tile selection: multiple of 8 (or the full batch), capped at B.
    # When B >= 16 keep at least 2 grid steps so v7x megacore shards the
    # "parallel" axis across both TensorCores; harmless on v5e/v6e.
    bb = min(block_b, B)
    if bb == B and B >= 16:
        bb = _round_up(pl.cdiv(B, 2), 8)

    # Fuse the two GEMMs that share LHS x, fold the output biases, and feed the
    # MXU bf16 operands (f32 accumulation happens in the kernel).
    wcat = jnp.concatenate([w1, ws], axis=1).astype(jnp.bfloat16)   # [d_in, dh+do]
    w2_b = w2.astype(jnp.bfloat16)
    x_b = x.astype(jnp.bfloat16)
    b_out = (b2 + bs).astype(jnp.float32)                            # [1, d_out]
    b1_f = b1.astype(jnp.float32)

    grid = (pl.cdiv(B, bb),)

    return pl.pallas_call(
        _mlp_kernel,
        out_shape=jax.ShapeDtypeStruct((B, d_out), jnp.float32),
        grid_spec=pltpu.PrefetchScalarGridSpec(
            num_scalar_prefetch=0,
            grid=grid,
            in_specs=[
                pl.BlockSpec((bb, d_in), lambda i: (i, 0)),               # x tile
                pl.BlockSpec((d_in, d_hidden + d_out), lambda i: (0, 0)),  # [W1|Ws]
                pl.BlockSpec((1, d_hidden), lambda i: (0, 0)),             # b1
                pl.BlockSpec((d_hidden, d_out), lambda i: (0, 0)),         # W2
                pl.BlockSpec((1, d_out), lambda i: (0, 0)),                # b2+bs
            ],
            out_specs=pl.BlockSpec((bb, d_out), lambda i: (i, 0)),
        ),
        compiler_params=pltpu.CompilerParams(
            dimension_semantics=("parallel",)),
    )(x_b, wcat, b1_f, w2_b, b_out)


def _init_linear(key, fan_in, fan_out, dtype=jnp.float32):
    """PyTorch nn.Linear default init: U(-1/sqrt(fan_in), 1/sqrt(fan_in)).

    Returns W already transposed to [in, out] and b as [1, out]."""
    kw, kb = jax.random.split(key)
    bound = 1.0 / jnp.sqrt(jnp.asarray(fan_in, dtype))
    w = jax.random.uniform(kw, (fan_in, fan_out), dtype, -bound, bound)
    b = jax.random.uniform(kb, (1, fan_out), dtype, -bound, bound)
    return w, b


if __name__ == "__main__":
    dims = [32, 64, 16]          # _MLP(dims=[32, 64, 16], skip=True)
    batch = 8                    # small deterministic test shape

    key = jax.random.PRNGKey(0)
    kx, k1, k2, ks = jax.random.split(key, 4)

    x = jax.random.normal(kx, (batch, dims[0]), jnp.float32)

    w1, b1 = _init_linear(k1, dims[0], dims[1])   # Linear(32, 64)
    w2, b2 = _init_linear(k2, dims[1], dims[2])   # Linear(64, 16)
    ws, bs = _init_linear(ks, dims[0], dims[2])   # shortcut Linear(32, 16)

    out = mlp_forward(x, w1, b1, w2, b2, ws, bs)
    out = jax.block_until_ready(out)

    # Pure-JAX f32 reference (kernel uses bf16 MXU operands -> looser tolerance).
    ref = jnp.maximum(x @ w1 + b1, 0.0) @ w2 + b2 + (x @ ws + bs)
    assert out.shape == (batch, dims[-1])
    assert jnp.allclose(out, ref, atol=5e-2, rtol=5e-2), (
        float(jnp.max(jnp.abs(out - ref))))

    print("KERNEL_OK")
</pallas_src>

<mosaic_0001>
module attributes {stable_mosaic.version = 11 : i64} {
  func.func @_mlp_kernel(%arg0: i32, %arg1: memref<8x32xbf16, #tpu.memory_space<vmem>>, %arg2: memref<32x80xbf16, #tpu.memory_space<vmem>>, %arg3: memref<1x64xf32, #tpu.memory_space<vmem>>, %arg4: memref<64x16xbf16, #tpu.memory_space<vmem>>, %arg5: memref<1x16xf32, #tpu.memory_space<vmem>>, %arg6: memref<8x16xf32, #tpu.memory_space<vmem>>) attributes {dimension_semantics = [#tpu.dimension_semantics<parallel>], iteration_bounds = array<i64: 1>, scalar_prefetch = 0 : i64, scratch_operands = 0 : i64, tpu.core_type = #tpu.core_type<tc>, window_params = [{transform_indices = @transform_0, window_bounds = array<i64: 8, 32>}, {pipeline_mode = #tpu.pipeline_mode<synchronous>, transform_indices = @transform_1, window_bounds = array<i64: 32, 80>}, {pipeline_mode = #tpu.pipeline_mode<synchronous>, transform_indices = @transform_2, window_bounds = array<i64: 1, 64>}, {pipeline_mode = #tpu.pipeline_mode<synchronous>, transform_indices = @transform_3, window_bounds = array<i64: 64, 16>}, {pipeline_mode = #tpu.pipeline_mode<synchronous>, transform_indices = @transform_4, window_bounds = array<i64: 1, 16>}, {transform_indices = @transform_5, window_bounds = array<i64: 8, 16>}]} {
    %c0 = arith.constant 0 : index
    %c0_0 = arith.constant 0 : index
    %0 = vector.load %arg1[%c0, %c0_0] : memref<8x32xbf16, #tpu.memory_space<vmem>>, vector<8x32xbf16>
    %c0_1 = arith.constant 0 : index
    %c0_2 = arith.constant 0 : index
    %1 = vector.load %arg2[%c0_1, %c0_2] : memref<32x80xbf16, #tpu.memory_space<vmem>>, vector<32x80xbf16>
    %cst = arith.constant dense<0.000000e+00> : vector<8x80xf32>
    %2 = tpu.matmul %0, %1, %cst {dimension_numbers = #tpu.dot_dimension_numbers<[1], [0], [0], [1], [0, 0, 1, 1], [], []>} : vector<8x32xbf16>, vector<32x80xbf16>, vector<8x80xf32> -> vector<8x80xf32>
    %3 = vector.extract_strided_slice %2 {offsets = [0, 0], sizes = [8, 64], strides = [1, 1]} : vector<8x80xf32> to vector<8x64xf32>
    %c0_3 = arith.constant 0 : index
    %c0_4 = arith.constant 0 : index
    %4 = vector.load %arg3[%c0_3, %c0_4] : memref<1x64xf32, #tpu.memory_space<vmem>>, vector<1x64xf32>
    %5 = vector.broadcast %4 : vector<1x64xf32> to vector<8x64xf32>
    %6 = arith.addf %3, %5 : vector<8x64xf32>
    %cst_5 = arith.constant 0.000000e+00 : f32
    %7 = vector.broadcast %cst_5 : f32 to vector<8x64xf32>
    %8 = arith.maximumf %6, %7 : vector<8x64xf32>
    %9 = vector.extract_strided_slice %2 {offsets = [0, 64], sizes = [8, 16], strides = [1, 1]} : vector<8x80xf32> to vector<8x16xf32>
    %10 = arith.truncf %8 : vector<8x64xf32> to vector<8x64xbf16>
    %c0_6 = arith.constant 0 : index
    %c0_7 = arith.constant 0 : index
    %11 = vector.load %arg4[%c0_6, %c0_7] : memref<64x16xbf16, #tpu.memory_space<vmem>>, vector<64x16xbf16>
    %cst_8 = arith.constant dense<0.000000e+00> : vector<8x16xf32>
    %12 = tpu.matmul %10, %11, %cst_8 {dimension_numbers = #tpu.dot_dimension_numbers<[1], [0], [0], [1], [0, 0, 1, 1], [], []>} : vector<8x64xbf16>, vector<64x16xbf16>, vector<8x16xf32> -> vector<8x16xf32>
    %13 = arith.addf %12, %9 : vector<8x16xf32>
    %c0_9 = arith.constant 0 : index
    %c0_10 = arith.constant 0 : index
    %14 = vector.load %arg5[%c0_9, %c0_10] : memref<1x16xf32, #tpu.memory_space<vmem>>, vector<1x16xf32>
    %15 = vector.broadcast %14 : vector<1x16xf32> to vector<8x16xf32>
    %16 = arith.addf %13, %15 : vector<8x16xf32>
    %c0_11 = arith.constant 0 : index
    %c0_12 = arith.constant 0 : index
    %17 = vector.load %arg6[%c0_11, %c0_12] : memref<8x16xf32, #tpu.memory_space<vmem>>, vector<8x16xf32>
    tpu.vector_store %arg6[%c0_11, %c0_12], %16 {strides = array<i32>} : memref<8x16xf32, #tpu.memory_space<vmem>>, vector<8x16xf32>,
    return
  }
  func.func @transform_0(%arg0: i32) -> (i32, i32) {
    %c0_i32 = arith.constant 0 : i32
    %c0_i32_0 = arith.constant 0 : i32
    return %arg0, %c0_i32 : i32, i32
  }
  func.func @transform_1(%arg0: i32) -> (i32, i32) {
    %c0_i32 = arith.constant 0 : i32
    %c0_i32_0 = arith.constant 0 : i32
    %c0_i32_1 = arith.constant 0 : i32
    return %c0_i32, %c0_i32_0 : i32, i32
  }
  func.func @transform_2(%arg0: i32) -> (i32, i32) {
    %c0_i32 = arith.constant 0 : i32
    %c0_i32_0 = arith.constant 0 : i32
    %c0_i32_1 = arith.constant 0 : i32
    return %c0_i32, %c0_i32_0 : i32, i32
  }
  func.func @transform_3(%arg0: i32) -> (i32, i32) {
    %c0_i32 = arith.constant 0 : i32
    %c0_i32_0 = arith.constant 0 : i32
    %c0_i32_1 = arith.constant 0 : i32
    return %c0_i32, %c0_i32_0 : i32, i32
  }
  func.func @transform_4(%arg0: i32) -> (i32, i32) {
    %c0_i32 = arith.constant 0 : i32
    %c0_i32_0 = arith.constant 0 : i32
    %c0_i32_1 = arith.constant 0 : i32
    return %c0_i32, %c0_i32_0 : i32, i32
  }
  func.func @transform_5(%arg0: i32) -> (i32, i32) {
    %c0_i32 = arith.constant 0 : i32
    %c0_i32_0 = arith.constant 0 : i32
    return %arg0, %c0_i32 : i32, i32
  }
}

</mosaic_0001>

<llo_original>
// kernel: mlp_forward.1
$region0: #{mlp_forward.1}
  #allocation0 [shape = 'u32[]', space=smem, size = 0x4, offset = 0x4, fixed_abs, tag = 'smem constant byte address 0x4 - core index']
  #allocation1 [shape = 'u32[144,128]{1,0:T(1,128)}', space=vmem, size = 0x12000, scoped, tag = 'internal scratch']
  %s0 = inlined_call_operand.vmem [shape: bf16[8,32], index: 0, kind: input, shape index: {}]
  %s1 = inlined_call_operand.vmem [shape: bf16[32,80], index: 1, kind: input, shape index: {}]
  %s2 = inlined_call_operand.vmem [shape: f32[1,64], index: 2, kind: input, shape index: {}]
  %s3 = inlined_call_operand.vmem [shape: bf16[64,16], index: 3, kind: input, shape index: {}]
  %s4 = inlined_call_operand.vmem [shape: f32[1,16], index: 4, kind: input, shape index: {}]
  %s5 = inlined_call_operand.hbm [shape: f32[8,16], index: 5, kind: output, shape index: {}]
  %s6 = sld [smem:[#allocation0]]
  $region30: #{mlp_forward.1} parent=0
    _
  %s8 = ssub.s32 1, %s6
  %s9 = scalar_select 0, %s8, %s6
  $region1: #{mlp_forward.1} parent=0
    #allocation2 [shape = 'u8[4096]{0}', space=vmem, size = 0x1000, scoped, tag = 'output window, operand 0, single buffered']
    #allocation3 [shape = 's32[1]{0}', space=sflag, size = 0x4, scoped, tag = 'scoped memory for mlp_forward.1']
    %10 = vsyncpa [#allocation3], 0
    // Predicated region
    $region2: #{mlp_forward.1} parent=1 // pred_check
      _
    $region3: #{mlp_forward.1} parent=1 // pred_check_branch
      %12 = sbr.rel (0) target = $region5
    $region4: #{mlp_forward.1} parent=1 // pred_region
      _
    $region5: #{mlp_forward.1} parent=1 // pred_fallthru
      _
    // Predicated region
    $region6: #{mlp_forward.1} parent=1 // pred_check
      _
    $region7: #{mlp_forward.1} parent=1 // pred_check_branch
      %14 = sbr.rel (0) target = $region9
    $region8: #{mlp_forward.1} parent=1 // pred_region
      _
    $region9: #{mlp_forward.1} parent=1 // pred_fallthru
      _
    // Predicated region
    $region10: #{mlp_forward.1} parent=1 // pred_check
      _
    $region11: #{mlp_forward.1} parent=1 // pred_check_branch
      %16 = sbr.rel (0) target = $region13
    $region12: #{mlp_forward.1} parent=1 // pred_region
      _
    $region13: #{mlp_forward.1} parent=1 // pred_fallthru
      _
    // Predicated region
    $region14: #{mlp_forward.1} parent=1 // pred_check
      _
    $region15: #{mlp_forward.1} parent=1 // pred_check_branch
      %18 = sbr.rel (0) target = $region17
    $region16: #{mlp_forward.1} parent=1 // pred_region
      _
    $region17: #{mlp_forward.1} parent=1 // pred_fallthru
      _
    // Predicated region
    $region18: #{mlp_forward.1} parent=1 // pred_check
      _
    $region19: #{mlp_forward.1} parent=1 // pred_check_branch
      %20 = sbr.rel (0) target = $region21
    $region20: #{mlp_forward.1} parent=1 // pred_region
      _
    $region21: #{mlp_forward.1} parent=1 // pred_fallthru
      _
    %v22 = vld [vmem:[%s0] sm:$0xf]
    %v23 = vld [vmem:[%s1] sm:$0xf]
    %v24 = vld [vmem:[%s1 + $0x4] sm:$0xf]
    %v25 = vld [vmem:[%s1 + $0x8] sm:$0xf]
    %v26 = vld [vmem:[%s1 + $0xc] sm:$0xf]
    %v31 = vunpack.c.l.b16 %v23
    %v32 = vunpack.c.l.b16 %v24
    %v33 = vunpack.c.l.b16 %v25
    %v34 = vunpack.c.l.b16 %v26
    %v35 = vpack.c.b16 %v32, %v31
    %v36 = vpack.c.b16 %v34, %v33
    %vm39 = vcmask 261120
    %v41 = vsel %vm39, %v22, 0
    %43 = vmatprep.subr.bf16.mxu0 0
    %44 = vmatpush1.bf16.msra.mxu0 %v35
    %45 = vmatprep.subr.bf16.mxu0 0
    %46 = vmatpush1.bf16.msra.mxu0 %v36
    %47 = vmatprep.subr.bf16.mxu0 0
    %48 = vmatpush1.bf16.msra.mxu0 0
    %49 = vmatprep.subr.bf16.mxu0 0
    %50 = vmatpush1.bf16.msra.mxu0 0
    %51 = vmatprep.subr.bf16.mxu0 0
    %52 = vmatpush1.bf16.msra.mxu0 0
    %53 = vmatprep.subr.bf16.mxu0 0
    %54 = vmatpush1.bf16.msra.mxu0 0
    %55 = vmatprep.subr.bf16.mxu0 0
    %56 = vmatpush1.bf16.msra.mxu0 0
    %57 = vmatprep.subr.bf16.mxu0 0
    %58 = vmatpush1.bf16.msra.mxu0 0
    %59 = vmatprep.subr.bf16.mxu0 0
    %60 = vmatpush1.bf16.msra.mxu0 0
    %61 = vmatprep.subr.bf16.mxu0 0
    %62 = vmatpush1.bf16.msra.mxu0 0
    %63 = vmatprep.subr.bf16.mxu0 0
    %64 = vmatpush1.bf16.msra.mxu0 0
    %65 = vmatprep.subr.bf16.mxu0 0
    %66 = vmatpush1.bf16.msra.mxu0 0
    %67 = vmatprep.subr.bf16.mxu0 0
    %68 = vmatpush1.bf16.msra.mxu0 0
    %69 = vmatprep.subr.bf16.mxu0 0
    %70 = vmatpush1.bf16.msra.mxu0 0
    %71 = vmatprep.subr.bf16.mxu0 0
    %72 = vmatpush1.bf16.msra.mxu0 0
    %73 = vmatprep.subr.bf16.mxu0 0
    %74 = vmatpush1.bf16.msra.mxu0 0
    %75 = vmatprep.mubr.bf16.mxu0 0
    %76 = vmatmul.mubr.bf16.gmra.mrb[0].mxu0 %v41
    %v77 = vpop.f32.mrb[0].mxu0
    %v78 = vadd.f32 0.0, %v77
    %v79 = vpop.f32.mrb[0].mxu0
    %v80 = vpop.f32.mrb[0].mxu0
    %v81 = vpop.f32.mrb[0].mxu0
    %82 = vdwg.mxu0
    %v83 = vld [vmem:[%s2] sm:$0x1]
    %v85 = vlaneseq
    %v86 = vshrl.u32 %v85, 7
    %v87 = vsub.s32 0, %v86
    %v88 = vrot.slane %v83, %v87
    %v90 = vadd.f32 %v78, %v88
    %v91 = vmax.f32 %v90, 0.0
    %v92 = vpack.c.bf16 %v91, %v91
    %v93 = vld [vmem:[%s3] sm:$0xf]
    %v94 = vld [vmem:[%s3 + $0x4] sm:$0xf]
    %v95 = vld [vmem:[%s3 + $0x8] sm:$0xf]
    %v96 = vld [vmem:[%s3 + $0xc] sm:$0xf]
    %v97 = vld [vmem:[%s3 + $0x10] sm:$0xf]
    %v98 = vld [vmem:[%s3 + $0x14] sm:$0xf]
    %v99 = vld [vmem:[%s3 + $0x18] sm:$0xf]
    %v100 = vld [vmem:[%s3 + $0x1c] sm:$0xf]
    %v109 = vunpack.c.l.b16 %v93
    %v110 = vunpack.c.l.b16 %v94
    %v111 = vunpack.c.l.b16 %v95
    %v112 = vunpack.c.l.b16 %v96
    %v113 = vunpack.c.l.b16 %v97
    %v114 = vunpack.c.l.b16 %v98
    %v115 = vunpack.c.l.b16 %v99
    %v116 = vunpack.c.l.b16 %v100
    %v117 = vpack.c.b16 %v110, %v109
    %v118 = vpack.c.b16 %v112, %v111
    %v119 = vpack.c.b16 %v114, %v113
    %v120 = vpack.c.b16 %v116, %v115
    %126 = vrot.lane.b32.xlu0 %v78, 64
    %v127 = vpop.permute.xlu0 %126
    %vm129 = vcmask 523264
    %v131 = vsel %vm129, %v92, 0
    %133 = vmatprep.subr.bf16.mxu0 0
    %134 = vmatpush1.bf16.msra.mxu0 %v117
    %135 = vmatprep.subr.bf16.mxu0 0
    %136 = vmatpush1.bf16.msra.mxu0 %v118
    %137 = vmatprep.subr.bf16.mxu0 0
    %138 = vmatpush1.bf16.msra.mxu0 %v119
    %139 = vmatprep.subr.bf16.mxu0 0
    %140 = vmatpush1.bf16.msra.mxu0 %v120
    %141 = vmatprep.subr.bf16.mxu0 0
    %142 = vmatpush1.bf16.msra.mxu0 0
    %143 = vmatprep.subr.bf16.mxu0 0
    %144 = vmatpush1.bf16.msra.mxu0 0
    %145 = vmatprep.subr.bf16.mxu0 0
    %146 = vmatpush1.bf16.msra.mxu0 0
    %147 = vmatprep.subr.bf16.mxu0 0
    %148 = vmatpush1.bf16.msra.mxu0 0
    %149 = vmatprep.subr.bf16.mxu0 0
    %150 = vmatpush1.bf16.msra.mxu0 0
    %151 = vmatprep.subr.bf16.mxu0 0
    %152 = vmatpush1.bf16.msra.mxu0 0
    %153 = vmatprep.subr.bf16.mxu0 0
    %154 = vmatpush1.bf16.msra.mxu0 0
    %155 = vmatprep.subr.bf16.mxu0 0
    %156 = vmatpush1.bf16.msra.mxu0 0
    %157 = vmatprep.subr.bf16.mxu0 0
    %158 = vmatpush1.bf16.msra.mxu0 0
    %159 = vmatprep.subr.bf16.mxu0 0
    %160 = vmatpush1.bf16.msra.mxu0 0
    %161 = vmatprep.subr.bf16.mxu0 0
    %162 = vmatpush1.bf16.msra.mxu0 0
    %163 = vmatprep.subr.bf16.mxu0 0
    %164 = vmatpush1.bf16.msra.mxu0 0
    %165 = vmatprep.mubr.bf16.mxu0 0
    %166 = vmatmul.mubr.bf16.gmra.mrb[0].mxu0 %v131
    %v167 = vpop.f32.mrb[0].mxu0
    %v168 = vadd.f32 %v127, %v167
    %v169 = vpop.f32.mrb[0].mxu0
    %v170 = vpop.f32.mrb[0].mxu0
    %v171 = vpop.f32.mrb[0].mxu0
    %172 = vdwg.mxu0
    %v173 = vld [vmem:[%s4] sm:$0x1]
    %v175 = vlaneseq
    %v176 = vshrl.u32 %v175, 7
    %v177 = vsub.s32 0, %v176
    %v178 = vrot.slane %v173, %v177
    %v180 = vadd.f32 %v168, %v178
    %vm181 = vcmask 130048
    %182 = vst.msk [vmem:[#allocation2] sm:$0xff] %vm181, %v180
    // Predicated region
    $region22: #{mlp_forward.1} parent=1 // pred_check
      _
    $region23: #{mlp_forward.1} parent=1 // pred_check_branch
      %184 = sbr.rel (0) target = $region25
    $region24: #{mlp_forward.1} parent=1 // pred_region
      %s186 = ssub.s32 128, 128
      %187 = vsyncadd [#allocation3], %s186
      %s189 = sshll.u32 [#allocation2], 4
      %s190 = int_to_ptr.vmem [resolvable:$true] %s189
      %192 = dma.vmem_to_hbm [thread:$0]  %s190, 128, %s5, [#allocation3]
    $region25: #{mlp_forward.1} parent=1 // pred_fallthru
      _
    // Predicated region
    $region26: #{mlp_forward.1} parent=1 // pred_check
      _
    $region27: #{mlp_forward.1} parent=1 // pred_check_branch
      %194 = sbr.rel (0) target = $region29
    $region28: #{mlp_forward.1} parent=1 // pred_region
      %195 = dma.done [#allocation3], 128
    $region29: #{mlp_forward.1} parent=1 // pred_fallthru
      _
    %196 = vsyncpa [#allocation3], 1

</llo_original>
